<compile_context>
chip_gen: v5e
topology: v5e:2x2
jax: 0.10.0
libtpu: 0.0.40
codegen_flags: <defaults>
</compile_context>

<pallas_src>
import functools

import jax
import jax.numpy as jnp
from jax.experimental import pallas as pl
from jax.experimental.pallas import tpu as pltpu

BN_EPS = 1e-5
LANES = 128
VMEM_LIMIT = 48 * 1024 * 1024        # v7x-safe (64 MiB physical); fine on v5e/v6e
MAX_TILE_K = 4096                     # 2 * 512 * 4096 * 2B = 8 MiB of A double-buffer
MAX_TILE_M2 = 2048                    # pass-2 row tile cap (pure streaming pass)
X_RESIDENT_BYTES = 8 * 1024 * 1024    # resident x budget (x2 pipeline buffers)


def _round_up(v, m):
    return (v + m - 1) // m * m


def _pick_tile_m(n):
    # Keep tile_m modest (v7x megacore wants several row blocks); grow tile_k instead.
    if n >= 1024:
        return 512
    if n >= 256:
        return 256
    if n >= 128:
        return 128
    return _round_up(max(n, 8), 8)


def _largest_divisor_at_most(n, cap):
    best = 1
    for d in range(1, n + 1):
        if d > cap:
            break
        if n % d == 0:
            best = d
    return best


def _normalized_adjacency_bf16(edge_index, num_nodes, padded_size):
    """Symmetrically-normalized adjacency with self-loops (PyG gcn_norm),
    scattered directly into a bf16 [padded, padded] buffer (padding stays 0)."""
    loop = jnp.arange(num_nodes, dtype=edge_index.dtype)
    row = jnp.concatenate([edge_index[0], loop])   # source
    col = jnp.concatenate([edge_index[1], loop])   # target
    deg = jnp.zeros((num_nodes,), jnp.float32).at[col].add(1.0)
    deg_inv_sqrt = jnp.where(deg > 0, 1.0 / jnp.sqrt(deg), 0.0)
    edge_w = (deg_inv_sqrt[row] * deg_inv_sqrt[col]).astype(jnp.bfloat16)
    # TODO(synk): cache this across calls (graph is static) or go sparse O(E).
    return jnp.zeros((padded_size, padded_size), jnp.bfloat16).at[col, row].add(edge_w)


# ---------- Pass 1: tiled aggregation + linear + BN partial stats ----------
def _aggregate_linear_kernel(a_ref, x_ref, w_ref, h_ref, stats_ref, acc_ref,
                             *, tile_k, x_resident):
    k = pl.program_id(1)

    @pl.when(k == 0)
    def _():
        acc_ref[...] = jnp.zeros_like(acc_ref)

    if x_resident:
        start = pl.multiple_of(k * tile_k, tile_k)
        x_blk = x_ref[pl.ds(start, tile_k), :]
    else:
        x_blk = x_ref[...]

    # acc[tile_m, Cin*] += A[tile_m, tile_k] @ x[tile_k, Cin*]  (bf16 in, f32 acc)
    acc_ref[...] += jnp.dot(a_ref[...], x_blk, preferred_element_type=jnp.float32)

    @pl.when(k == pl.num_programs(1) - 1)
    def _():
        # h[tile_m, Cpad] = (A @ x) @ W^T   (bf16 operands, f32 accumulate).
        # The GCN bias is a per-channel constant, exactly absorbed by the
        # following train-mode BatchNorm, so it never enters the kernel.
        hw = jnp.dot(acc_ref[...].astype(jnp.bfloat16), w_ref[...],
                     preferred_element_type=jnp.float32)
        h_ref[...] = hw.astype(h_ref.dtype)            # bf16 intermediate
        # per-row-tile partial sum / sum-of-squares (padded rows are exactly 0)
        psum = jnp.sum(hw, axis=0, keepdims=True)       # (1, Cpad)
        psq = jnp.sum(hw * hw, axis=0, keepdims=True)    # (1, Cpad)
        sub = jax.lax.broadcasted_iota(jnp.int32, (2, hw.shape[1]), 0)
        stats_ref[...] = jnp.where(sub == 0, psum, psq)[None]   # (1, 2, Cpad)


# ---------- Pass 2: normalize (precomputed scale/shift) + ReLU ----------
def _bn_relu_kernel(h_ref, scale_ref, shift_ref, o_ref):
    o_ref[...] = jnp.maximum(
        h_ref[...].astype(jnp.float32) * scale_ref[...] + shift_ref[...], 0.0)


def graph_conv_block(x, edge_index, weight, bias, gamma, beta):
    """x: [N, Cin] f32; edge_index: [2, E] int32; weight: [Cout, Cin];
    bias/gamma/beta: [Cout]. Returns [N, Cout] f32."""
    N, Cin = x.shape
    Cout = weight.shape[0]

    tile_m = _pick_tile_m(N)
    n_pad = _round_up(N, tile_m)
    n_row = n_pad // tile_m
    c_pad = _round_up(Cout, LANES)

    # Contraction tile: largest multiple of tile_m that divides n_pad, capped.
    k_factor = _largest_divisor_at_most(n_row, max(1, MAX_TILE_K // tile_m))
    tile_k = tile_m * k_factor
    n_k = n_row // k_factor

    # x fully VMEM-resident (128-lane padded Cin) when it fits; else streamed.
    cin_res = _round_up(Cin, LANES)
    x_resident = n_pad * cin_res * 2 <= X_RESIDENT_BYTES
    cin_p = cin_res if x_resident else Cin

    # --- glue: bf16 normalized adjacency + padded operands ---
    a_hat = _normalized_adjacency_bf16(edge_index, N, n_pad)
    x_pad = jnp.pad(x.astype(jnp.bfloat16), ((0, n_pad - N), (0, cin_p - Cin)))
    w_t = jnp.pad(weight.T.astype(jnp.bfloat16),
                  ((0, cin_p - Cin), (0, c_pad - Cout)))
    gamma_p = jnp.pad(gamma.astype(jnp.float32), (0, c_pad - Cout))
    beta_p = jnp.pad(beta.astype(jnp.float32), (0, c_pad - Cout))
    # conv bias cancels exactly in train-mode BN; intentionally unused.
    del bias

    if x_resident:
        x_spec = pl.BlockSpec((n_pad, cin_p), lambda i, k: (0, 0))      # resident
    else:
        x_spec = pl.BlockSpec((tile_k, cin_p), lambda i, k: (k, 0))     # streamed

    # --- pass 1: h_raw = (A_hat @ x) @ W^T (bf16), plus BN partial stats ---
    h_raw, stats = pl.pallas_call(
        functools.partial(_aggregate_linear_kernel,
                          tile_k=tile_k, x_resident=x_resident),
        out_shape=(
            jax.ShapeDtypeStruct((n_pad, c_pad), jnp.bfloat16),
            jax.ShapeDtypeStruct((n_row, 2, c_pad), jnp.float32),
        ),
        grid_spec=pltpu.PrefetchScalarGridSpec(
            num_scalar_prefetch=0,
            grid=(n_row, n_k),
            in_specs=[
                pl.BlockSpec((tile_m, tile_k), lambda i, k: (i, k)),   # A_hat tile
                x_spec,                                                # x
                pl.BlockSpec((cin_p, c_pad), lambda i, k: (0, 0)),     # W^T (resident)
            ],
            out_specs=[
                pl.BlockSpec((tile_m, c_pad), lambda i, k: (i, 0)),      # h_raw (bf16)
                pl.BlockSpec((1, 2, c_pad), lambda i, k: (i, 0, 0)),     # BN partials
            ],
            scratch_shapes=[pltpu.VMEM((tile_m, cin_p), jnp.float32)],
        ),
        compiler_params=pltpu.CompilerParams(
            dimension_semantics=("parallel", "arbitrary"),
            vmem_limit_bytes=VMEM_LIMIT,
        ),
    )(a_hat, x_pad, w_t)

    # --- glue: fold partial stats into per-channel scale/shift (train-mode BN) ---
    total_sum = jnp.sum(stats[:, 0, :], axis=0)          # (Cpad,)
    total_sq = jnp.sum(stats[:, 1, :], axis=0)           # (Cpad,)
    mean = total_sum / N
    var = jnp.maximum(total_sq / N - mean * mean, 0.0)   # biased var (BN normalization)
    scale = gamma_p * jax.lax.rsqrt(var + BN_EPS)
    shift = beta_p - mean * scale                        # conv bias cancels here
    scale2 = scale[None, :]
    shift2 = shift[None, :]

    # --- pass 2: y = relu(h_raw * scale + shift), larger streaming row tile ---
    m2_factor = _largest_divisor_at_most(n_row, max(1, MAX_TILE_M2 // tile_m))
    tile_m2 = tile_m * m2_factor
    n_row2 = n_row // m2_factor
    # TODO(synk): alias the output over h_raw (input_output_aliases) once the
    # intermediate and output dtypes match.

    out_pad = pl.pallas_call(
        _bn_relu_kernel,
        out_shape=jax.ShapeDtypeStruct((n_pad, c_pad), jnp.float32),
        grid_spec=pltpu.PrefetchScalarGridSpec(
            num_scalar_prefetch=0,
            grid=(n_row2,),
            in_specs=[
                pl.BlockSpec((tile_m2, c_pad), lambda i: (i, 0)),
                pl.BlockSpec((1, c_pad), lambda i: (0, 0)),
                pl.BlockSpec((1, c_pad), lambda i: (0, 0)),
            ],
            out_specs=pl.BlockSpec((tile_m2, c_pad), lambda i: (i, 0)),
        ),
        compiler_params=pltpu.CompilerParams(
            dimension_semantics=("parallel",),
            vmem_limit_bytes=VMEM_LIMIT,
        ),
    )(h_raw, scale2, shift2)

    return out_pad[:N, :Cout]


# ---------------- pure-JAX f32 reference (sanity check in __main__) ----------------
def _reference(x, edge_index, weight, bias, gamma, beta):
    N = x.shape[0]
    loop = jnp.arange(N, dtype=edge_index.dtype)
    row = jnp.concatenate([edge_index[0], loop])
    col = jnp.concatenate([edge_index[1], loop])
    deg = jnp.zeros((N,), jnp.float32).at[col].add(1.0)
    dis = jnp.where(deg > 0, 1.0 / jnp.sqrt(deg), 0.0)
    a = jnp.zeros((N, N), jnp.float32).at[col, row].add(dis[row] * dis[col])
    h = a @ (x @ weight.T) + bias
    mean = h.mean(axis=0)
    var = ((h - mean) ** 2).mean(axis=0)
    y = (h - mean) * jax.lax.rsqrt(var + BN_EPS) * gamma + beta
    return jnp.maximum(y, 0.0)


if __name__ == "__main__":
    # GraphConvBlock(in_channel=8, out_channel=32), small deterministic example.
    N, Cin, Cout = 16, 8, 32
    key = jax.random.PRNGKey(0)
    kx, kw, kb = jax.random.split(key, 3)

    x = jax.random.normal(kx, (N, Cin), dtype=jnp.float32)

    # deterministic bidirectional ring graph: edge_index [2, 2N]
    src = jnp.arange(N, dtype=jnp.int32)
    dst = (src + 1) % N
    edge_index = jnp.concatenate(
        [jnp.stack([src, dst], axis=0), jnp.stack([dst, src], axis=0)], axis=1
    )

    weight = jax.random.normal(kw, (Cout, Cin), dtype=jnp.float32) * 0.1
    bias = jax.random.normal(kb, (Cout,), dtype=jnp.float32) * 0.01
    gamma = jnp.ones((Cout,), jnp.float32)
    beta = jnp.zeros((Cout,), jnp.float32)

    out = jax.jit(graph_conv_block)(x, edge_index, weight, bias, gamma, beta)
    jax.block_until_ready(out)
    assert out.shape == (N, Cout) and out.dtype == jnp.float32

    ref = _reference(x, edge_index, weight, bias, gamma, beta)
    max_err = float(jnp.max(jnp.abs(out - ref)))
    assert max_err < 1e-1, f"max abs error vs reference: {max_err}"
    print("KERNEL_OK")
</pallas_src>

<mosaic_0001>
module attributes {stable_mosaic.version = 11 : i64} {
  func.func @_aggregate_linear_kernel(%arg0: i32, %arg1: i32, %arg2: memref<16x16xbf16, #tpu.memory_space<vmem>>, %arg3: memref<16x128xbf16, #tpu.memory_space<vmem>>, %arg4: memref<128x128xbf16, #tpu.memory_space<vmem>>, %arg5: memref<16x128xbf16, #tpu.memory_space<vmem>>, %arg6: memref<1x2x128xf32, #tpu.memory_space<vmem>>, %arg7: memref<16x128xf32, #tpu.memory_space<vmem>>) attributes {dimension_semantics = [#tpu.dimension_semantics<parallel>, #tpu.dimension_semantics<arbitrary>], iteration_bounds = array<i64: 1, 1>, scalar_prefetch = 0 : i64, scratch_operands = 1 : i64, tpu.core_type = #tpu.core_type<tc>, window_params = [{transform_indices = @transform_0, window_bounds = array<i64: 16, 16>}, {pipeline_mode = #tpu.pipeline_mode<synchronous>, transform_indices = @transform_1, window_bounds = array<i64: 16, 128>}, {pipeline_mode = #tpu.pipeline_mode<synchronous>, transform_indices = @transform_2, window_bounds = array<i64: 128, 128>}, {transform_indices = @transform_3, window_bounds = array<i64: 16, 128>}, {transform_indices = @transform_4, window_bounds = array<i64: 1, 2, 128>}]} {
    %c0_i32 = arith.constant 0 : i32
    %0 = arith.cmpi eq, %arg1, %c0_i32 : i32
    %1 = arith.extui %0 : i1 to i32
    %c0_i32_0 = arith.constant 0 : i32
    %2 = arith.cmpi ne, %1, %c0_i32_0 : i32
    scf.if %2 {
      %cst_9 = arith.constant 0.000000e+00 : f32
      %15 = vector.broadcast %cst_9 : f32 to vector<16x128xf32>
      %c0_10 = arith.constant 0 : index
      %c0_11 = arith.constant 0 : index
      %16 = vector.load %arg7[%c0_10, %c0_11] : memref<16x128xf32, #tpu.memory_space<vmem>>, vector<16x128xf32>
      tpu.vector_store %arg7[%c0_10, %c0_11], %15 {strides = array<i32>} : memref<16x128xf32, #tpu.memory_space<vmem>>, vector<16x128xf32>,
    } else {
    }
    %c16_i32 = arith.constant 16 : i32
    %3 = arith.muli %arg1, %c16_i32 : i32
    %4 = tpu.assume_multiple %3, 16 : i32
    %5 = arith.index_cast %4 : i32 to index
    %c0 = arith.constant 0 : index
    %6 = vector.load %arg3[%5, %c0] : memref<16x128xbf16, #tpu.memory_space<vmem>>, vector<16x128xbf16>
    %c0_1 = arith.constant 0 : index
    %c0_2 = arith.constant 0 : index
    %7 = vector.load %arg7[%c0_1, %c0_2] : memref<16x128xf32, #tpu.memory_space<vmem>>, vector<16x128xf32>
    %c0_3 = arith.constant 0 : index
    %c0_4 = arith.constant 0 : index
    %8 = vector.load %arg2[%c0_3, %c0_4] : memref<16x16xbf16, #tpu.memory_space<vmem>>, vector<16x16xbf16>
    %cst = arith.constant dense<0.000000e+00> : vector<16x128xf32>
    %9 = tpu.matmul %8, %6, %cst {dimension_numbers = #tpu.dot_dimension_numbers<[1], [0], [0], [1], [0, 0, 1, 1], [], []>} : vector<16x16xbf16>, vector<16x128xbf16>, vector<16x128xf32> -> vector<16x128xf32>
    %10 = arith.addf %7, %9 : vector<16x128xf32>
    %c0_5 = arith.constant 0 : index
    %c0_6 = arith.constant 0 : index
    %11 = vector.load %arg7[%c0_5, %c0_6] : memref<16x128xf32, #tpu.memory_space<vmem>>, vector<16x128xf32>
    tpu.vector_store %arg7[%c0_5, %c0_6], %10 {strides = array<i32>} : memref<16x128xf32, #tpu.memory_space<vmem>>, vector<16x128xf32>,
    %c0_i32_7 = arith.constant 0 : i32
    %12 = arith.cmpi eq, %arg1, %c0_i32_7 : i32
    %13 = arith.extui %12 : i1 to i32
    %c0_i32_8 = arith.constant 0 : i32
    %14 = arith.cmpi ne, %13, %c0_i32_8 : i32
    scf.if %14 {
      %c0_9 = arith.constant 0 : index
      %c0_10 = arith.constant 0 : index
      %15 = vector.load %arg7[%c0_9, %c0_10] : memref<16x128xf32, #tpu.memory_space<vmem>>, vector<16x128xf32>
      %16 = arith.truncf %15 : vector<16x128xf32> to vector<16x128xbf16>
      %c0_11 = arith.constant 0 : index
      %c0_12 = arith.constant 0 : index
      %17 = vector.load %arg4[%c0_11, %c0_12] : memref<128x128xbf16, #tpu.memory_space<vmem>>, vector<128x128xbf16>
      %cst_13 = arith.constant dense<0.000000e+00> : vector<16x128xf32>
      %18 = tpu.matmul %16, %17, %cst_13 {dimension_numbers = #tpu.dot_dimension_numbers<[1], [0], [0], [1], [0, 0, 1, 1], [], []>} : vector<16x128xbf16>, vector<128x128xbf16>, vector<16x128xf32> -> vector<16x128xf32>
      %19 = arith.truncf %18 : vector<16x128xf32> to vector<16x128xbf16>
      %c0_14 = arith.constant 0 : index
      %c0_15 = arith.constant 0 : index
      %20 = vector.load %arg5[%c0_14, %c0_15] : memref<16x128xbf16, #tpu.memory_space<vmem>>, vector<16x128xbf16>
      tpu.vector_store %arg5[%c0_14, %c0_15], %19 {strides = array<i32>} : memref<16x128xbf16, #tpu.memory_space<vmem>>, vector<16x128xbf16>,
      %cst_16 = arith.constant dense<0.000000e+00> : vector<128xf32>
      %21 = vector.multi_reduction <add>, %18, %cst_16 [0] : vector<16x128xf32> to vector<128xf32>
      %22 = vector.shape_cast %21 : vector<128xf32> to vector<1x128xf32>
      %23 = arith.mulf %18, %18 : vector<16x128xf32>
      %cst_17 = arith.constant dense<0.000000e+00> : vector<128xf32>
      %24 = vector.multi_reduction <add>, %23, %cst_17 [0] : vector<16x128xf32> to vector<128xf32>
      %25 = vector.shape_cast %24 : vector<128xf32> to vector<1x128xf32>
      %26 = tpu.iota {dimensions = array<i32: 0>} : vector<2x128xi32>
      %c0_i32_18 = arith.constant 0 : i32
      %27 = vector.broadcast %c0_i32_18 : i32 to vector<2x128xi32>
      %28 = arith.cmpi eq, %26, %27 : vector<2x128xi32>
      %29 = vector.shape_cast %22 : vector<1x128xf32> to vector<1x128xf32>
      %30 = vector.broadcast %29 : vector<1x128xf32> to vector<2x128xf32>
      %31 = vector.shape_cast %25 : vector<1x128xf32> to vector<1x128xf32>
      %32 = vector.broadcast %31 : vector<1x128xf32> to vector<2x128xf32>
      %33 = arith.select %28, %30, %32 : vector<2x128xi1>, vector<2x128xf32>
      %34 = vector.shape_cast %33 : vector<2x128xf32> to vector<1x2x128xf32>
      %c0_19 = arith.constant 0 : index
      %c0_20 = arith.constant 0 : index
      %c0_21 = arith.constant 0 : index
      %35 = vector.load %arg6[%c0_19, %c0_20, %c0_21] : memref<1x2x128xf32, #tpu.memory_space<vmem>>, vector<1x2x128xf32>
      tpu.vector_store %arg6[%c0_19, %c0_20, %c0_21], %34 {strides = array<i32>} : memref<1x2x128xf32, #tpu.memory_space<vmem>>, vector<1x2x128xf32>,
    } else {
    }
    return
  }
  func.func @transform_0(%arg0: i32, %arg1: i32) -> (i32, i32) {
    %c0_i32 = arith.constant 0 : i32
    return %arg0, %arg1 : i32, i32
  }
  func.func @transform_1(%arg0: i32, %arg1: i32) -> (i32, i32) {
    %c0_i32 = arith.constant 0 : i32
    %c0_i32_0 = arith.constant 0 : i32
    %c0_i32_1 = arith.constant 0 : i32
    return %c0_i32, %c0_i32_0 : i32, i32
  }
  func.func @transform_2(%arg0: i32, %arg1: i32) -> (i32, i32) {
    %c0_i32 = arith.constant 0 : i32
    %c0_i32_0 = arith.constant 0 : i32
    %c0_i32_1 = arith.constant 0 : i32
    return %c0_i32, %c0_i32_0 : i32, i32
  }
  func.func @transform_3(%arg0: i32, %arg1: i32) -> (i32, i32) {
    %c0_i32 = arith.constant 0 : i32
    %c0_i32_0 = arith.constant 0 : i32
    return %arg0, %c0_i32 : i32, i32
  }
  func.func @transform_4(%arg0: i32, %arg1: i32) -> (i32, i32, i32) {
    %c0_i32 = arith.constant 0 : i32
    %c0_i32_0 = arith.constant 0 : i32
    %c0_i32_1 = arith.constant 0 : i32
    return %arg0, %c0_i32, %c0_i32_0 : i32, i32, i32
  }
}

module attributes {stable_mosaic.version = 11 : i64} {
  func.func @_bn_relu_kernel(%arg0: i32, %arg1: memref<16x128xbf16, #tpu.memory_space<vmem>>, %arg2: memref<1x128xf32, #tpu.memory_space<vmem>>, %arg3: memref<1x128xf32, #tpu.memory_space<vmem>>, %arg4: memref<16x128xf32, #tpu.memory_space<vmem>>) attributes {dimension_semantics = [#tpu.dimension_semantics<parallel>], iteration_bounds = array<i64: 1>, scalar_prefetch = 0 : i64, scratch_operands = 0 : i64, tpu.core_type = #tpu.core_type<tc>, window_params = [{transform_indices = @transform_0, window_bounds = array<i64: 16, 128>}, {pipeline_mode = #tpu.pipeline_mode<synchronous>, transform_indices = @transform_1, window_bounds = array<i64: 1, 128>}, {pipeline_mode = #tpu.pipeline_mode<synchronous>, transform_indices = @transform_2, window_bounds = array<i64: 1, 128>}, {transform_indices = @transform_3, window_bounds = array<i64: 16, 128>}]} {
    %c0 = arith.constant 0 : index
    %c0_0 = arith.constant 0 : index
    %0 = vector.load %arg1[%c0, %c0_0] : memref<16x128xbf16, #tpu.memory_space<vmem>>, vector<16x128xbf16>
    %1 = arith.extf %0 : vector<16x128xbf16> to vector<16x128xf32>
    %c0_1 = arith.constant 0 : index
    %c0_2 = arith.constant 0 : index
    %2 = vector.load %arg2[%c0_1, %c0_2] : memref<1x128xf32, #tpu.memory_space<vmem>>, vector<1x128xf32>
    %3 = vector.broadcast %2 : vector<1x128xf32> to vector<16x128xf32>
    %4 = arith.mulf %1, %3 : vector<16x128xf32>
    %c0_3 = arith.constant 0 : index
    %c0_4 = arith.constant 0 : index
    %5 = vector.load %arg3[%c0_3, %c0_4] : memref<1x128xf32, #tpu.memory_space<vmem>>, vector<1x128xf32>
    %6 = vector.broadcast %5 : vector<1x128xf32> to vector<16x128xf32>
    %7 = arith.addf %4, %6 : vector<16x128xf32>
    %cst = arith.constant 0.000000e+00 : f32
    %8 = vector.broadcast %cst : f32 to vector<16x128xf32>
    %9 = arith.maximumf %7, %8 : vector<16x128xf32>
    %c0_5 = arith.constant 0 : index
    %c0_6 = arith.constant 0 : index
    %10 = vector.load %arg4[%c0_5, %c0_6] : memref<16x128xf32, #tpu.memory_space<vmem>>, vector<16x128xf32>
    tpu.vector_store %arg4[%c0_5, %c0_6], %9 {strides = array<i32>} : memref<16x128xf32, #tpu.memory_space<vmem>>, vector<16x128xf32>,
    return
  }
  func.func @transform_0(%arg0: i32) -> (i32, i32) {
    %c0_i32 = arith.constant 0 : i32
    %c0_i32_0 = arith.constant 0 : i32
    return %arg0, %c0_i32 : i32, i32
  }
  func.func @transform_1(%arg0: i32) -> (i32, i32) {
    %c0_i32 = arith.constant 0 : i32
    %c0_i32_0 = arith.constant 0 : i32
    %c0_i32_1 = arith.constant 0 : i32
    return %c0_i32, %c0_i32_0 : i32, i32
  }
  func.func @transform_2(%arg0: i32) -> (i32, i32) {
    %c0_i32 = arith.constant 0 : i32
    %c0_i32_0 = arith.constant 0 : i32
    %c0_i32_1 = arith.constant 0 : i32
    return %c0_i32, %c0_i32_0 : i32, i32
  }
  func.func @transform_3(%arg0: i32) -> (i32, i32) {
    %c0_i32 = arith.constant 0 : i32
    %c0_i32_0 = arith.constant 0 : i32
    return %arg0, %c0_i32 : i32, i32
  }
}

</mosaic_0001>

<llo_original>
// kernel: graph_conv_block.3
$region0: #{graph_conv_block.3}
  #allocation0 [shape = 'u32[]', space=smem, size = 0x4, offset = 0x4, fixed_abs, tag = 'smem constant byte address 0x4 - core index']
  #allocation1 [shape = 'u32[72,128]{1,0:T(1,128)}', space=vmem, size = 0x9000, scoped, tag = 'internal scratch']
  %s0 = inlined_call_operand.vmem [shape: bf16[16,128], index: 0, kind: input, shape index: {}]
  %s1 = inlined_call_operand.vmem [shape: f32[1,128], index: 1, kind: input, shape index: {}]
  %s2 = inlined_call_operand.vmem [shape: f32[1,128], index: 2, kind: input, shape index: {}]
  %s3 = inlined_call_operand.hbm [shape: f32[16,128], index: 3, kind: output, shape index: {}]
  %s4 = sld [smem:[#allocation0]]
  $region22: #{graph_conv_block.3} parent=0
    _
  %s6 = ssub.s32 1, %s4
  %s7 = scalar_select 0, %s6, %s4
  $region1: #{graph_conv_block.3} parent=0
    #allocation2 [shape = 'u8[8192]{0}', space=vmem, size = 0x2000, scoped, tag = 'output window, operand 0, single buffered']
    #allocation3 [shape = 's32[1]{0}', space=sflag, size = 0x4, scoped, tag = 'scoped memory for graph_conv_block.3']
    %8 = vsyncpa [#allocation3], 0
    // Predicated region
    $region2: #{graph_conv_block.3} parent=1 // pred_check
      _
    $region3: #{graph_conv_block.3} parent=1 // pred_check_branch
      %10 = sbr.rel (0) target = $region5
    $region4: #{graph_conv_block.3} parent=1 // pred_region
      _
    $region5: #{graph_conv_block.3} parent=1 // pred_fallthru
      _
    // Predicated region
    $region6: #{graph_conv_block.3} parent=1 // pred_check
      _
    $region7: #{graph_conv_block.3} parent=1 // pred_check_branch
      %12 = sbr.rel (0) target = $region9
    $region8: #{graph_conv_block.3} parent=1 // pred_region
      _
    $region9: #{graph_conv_block.3} parent=1 // pred_fallthru
      _
    // Predicated region
    $region10: #{graph_conv_block.3} parent=1 // pred_check
      _
    $region11: #{graph_conv_block.3} parent=1 // pred_check_branch
      %14 = sbr.rel (0) target = $region13
    $region12: #{graph_conv_block.3} parent=1 // pred_region
      _
    $region13: #{graph_conv_block.3} parent=1 // pred_fallthru
      _
    %v15 = vld [vmem:[%s0] sm:$0xf]
    %v16 = vld [vmem:[%s0 + $0x4] sm:$0xf]
    %v17 = vunpack.c.l.bf16 %v15
    %v18 = vunpack.c.l.bf16 %v16
    %v19 = vld [vmem:[%s1] sm:$0x1]
    %v21 = vperm.slane %v19, 0
    %v23 = vmul.f32 %v17, %v21
    %v24 = vmul.f32 %v18, %v21
    %v25 = vld [vmem:[%s2] sm:$0x1]
    %v27 = vperm.slane %v25, 0
    %v29 = vadd.f32 %v23, %v27
    %v30 = vadd.f32 %v24, %v27
    %v31 = vmax.f32 %v29, 0.0
    %v32 = vmax.f32 %v30, 0.0
    %33 = vst [vmem:[#allocation2] sm:$0xff] %v31
    %34 = vst [vmem:[#allocation2 + $0x8] sm:$0xff] %v32
    // Predicated region
    $region14: #{graph_conv_block.3} parent=1 // pred_check
      _
    $region15: #{graph_conv_block.3} parent=1 // pred_check_branch
      %36 = sbr.rel (0) target = $region17
    $region16: #{graph_conv_block.3} parent=1 // pred_region
      %38 = vsyncadd [#allocation3], 0
      %s39 = sshll.u32 [#allocation2], 4
      %s40 = int_to_ptr.vmem [resolvable:$true] %s39
      %s41 = sshll.u32 %s3, 4
      %s42 = int_to_ptr.hbm [resolvable:$true] %s41
      %47 = dma.vmem_to_hbm [thread:$0]  %s40, 256, %s42, [#allocation3], 128, 128, 8
    $region17: #{graph_conv_block.3} parent=1 // pred_fallthru
      _
    // Predicated region
    $region18: #{graph_conv_block.3} parent=1 // pred_check
      _
    $region19: #{graph_conv_block.3} parent=1 // pred_check_branch
      %49 = sbr.rel (0) target = $region21
    $region20: #{graph_conv_block.3} parent=1 // pred_region
      %51 = dma.done [#allocation3], 256
    $region21: #{graph_conv_block.3} parent=1 // pred_fallthru
      _
    %52 = vsyncpa [#allocation3], 1

// kernel: graph_conv_block.2
$region0: #{graph_conv_block.2}
  #allocation0 [shape = 'u32[]', space=smem, size = 0x4, offset = 0x4, fixed_abs, tag = 'smem constant byte address 0x4 - core index']
  #allocation1 [shape = 'u32[72,128]{1,0:T(1,128)}', space=vmem, size = 0x9000, scoped, tag = 'internal scratch']
  #allocation2 [shape = 'f32[16,128]{1,0:T(8,128)}', space=vmem, size = 0x2000, scoped, tag = 'scratch operand']
  %s0 = inlined_call_operand.vmem [shape: bf16[16,16], index: 0, kind: input, shape index: {}]
  %s1 = inlined_call_operand.vmem [shape: bf16[16,128], index: 1, kind: input, shape index: {}]
  %s2 = inlined_call_operand.vmem [shape: bf16[128,128], index: 2, kind: input, shape index: {}]
  %s3 = inlined_call_operand.vmem [shape: bf16[16,128], index: 3, kind: output, shape index: {0}]
  %s4 = inlined_call_operand.vmem [shape: f32[1,2,128], index: 4, kind: output, shape index: {1}]
  %5 = xla_tuple %s3, %s4
  %s6 = sld [smem:[#allocation0]]
  $region38: #{graph_conv_block.2} parent=0
    _
  %s8 = ssub.s32 1, %s6
  %s9 = scalar_select 0, %s8, %s6
  // Predicated region
  $region2: #{graph_conv_block.2} parent=0 // pred_check
    _
  $region3: #{graph_conv_block.2} parent=0 // pred_check_branch
    %11 = sbr.rel (0) target = $region5
  $region4: #{graph_conv_block.2} parent=0 // pred_region
    _
  $region5: #{graph_conv_block.2} parent=0 // pred_fallthru
    _
  // Predicated region
  $region6: #{graph_conv_block.2} parent=0 // pred_check
    _
  $region7: #{graph_conv_block.2} parent=0 // pred_check_branch
    %13 = sbr.rel (0) target = $region9
  $region8: #{graph_conv_block.2} parent=0 // pred_region
    _
  $region9: #{graph_conv_block.2} parent=0 // pred_fallthru
    _
  // Predicated region
  $region10: #{graph_conv_block.2} parent=0 // pred_check
    _
  $region11: #{graph_conv_block.2} parent=0 // pred_check_branch
    %15 = sbr.rel (0) target = $region13
  $region12: #{graph_conv_block.2} parent=0 // pred_region
    _
  $region13: #{graph_conv_block.2} parent=0 // pred_fallthru
    _
  %p17 = scmp.eq.s32.totalorder 0, 0
  // Predicated region
  $region14: #{graph_conv_block.2} parent=0 // pred_check
    %p18 = pneg %p17
  $region15: #{graph_conv_block.2} parent=0 // pred_check_branch
    %20 = sbr.rel (%p18) target = $region17
  $region16: #{graph_conv_block.2} parent=0 // pred_region
    %21 = vst [vmem:[#allocation2] sm:$0xff] 0.0
    %22 = vst [vmem:[#allocation2 + $0x8] sm:$0xff] 0.0
  $region17: #{graph_conv_block.2} parent=0 // pred_fallthru
    _
  %s23 = smul.u32 0, 16
  %s24 = sshra.s32 %s23, 3
  %s25 = sand.u32 %s23, 7
  %s26 = smul.addr %s24, 4
  %s27 = scalar_lea.vmem %s1, %s26
  %v28 = vld [vmem:[%s27] sm:$0xf]
  %v29 = vld [vmem:[%s27 + $0x4] sm:$0xf]
  %v30 = vld [vmem:[#allocation2] sm:$0xff]
  %v31 = vld [vmem:[#allocation2 + $0x8] sm:$0xff]
  %v32 = vld [vmem:[%s0] sm:$0xf]
  %v33 = vld [vmem:[%s0 + $0x4] sm:$0xf]
  %v36 = vunpack.c.l.b16 %v32
  %v37 = vunpack.c.l.b16 %v33
  %v38 = vpack.c.b16 %v37, %v36
  %v41 = vunpack.c.l.b16 %v28
  %v42 = vunpack.c.l.b16 %v29
  %v43 = vpack.c.b16 %v42, %v41
  %vm45 = vcmask 130048
  %v47 = vsel %vm45, %v38, 0
  %49 = vmatpush.bf16.msra.mxu0 0
  %50 = vmatpush.bf16.msra.mxu0 0
  %51 = vmatpush.bf16.msra.mxu0 0
  %52 = vmatpush.bf16.msra.mxu0 0
  %53 = vmatpush.bf16.msra.mxu0 0
  %54 = vmatpush.bf16.msra.mxu0 0
  %55 = vmatpush.bf16.msra.mxu0 0
  %56 = vmatpush.bf16.msra.mxu0 %v43
  %57 = vmatmul.bf16.gmra.mxu0 %v47
  %v58 = vpop.f32.mrf.mxu0
  %v59 = vadd.f32 0.0, %v58
  %v60 = vpop.f32.mrf.mxu0
  %v61 = vadd.f32 0.0, %v60
  %62 = vdwg.mxu0
  %v63 = vadd.f32 %v30, %v59
  %v64 = vadd.f32 %v31, %v61
  %65 = vst [vmem:[#allocation2] sm:$0xff] %v63
  %66 = vst [vmem:[#allocation2 + $0x8] sm:$0xff] %v64
  // Predicated region
  $region18: #{graph_conv_block.2} parent=0 // pred_check
    %p67 = pneg %p17
  $region19: #{graph_conv_block.2} parent=0 // pred_check_branch
    %69 = sbr.rel (%p67) target = $region21
  $region20: #{graph_conv_block.2} parent=0 // pred_region
    %v70 = vld [vmem:[#allocation2] sm:$0xff]
    %v71 = vld [vmem:[#allocation2 + $0x8] sm:$0xff]
    %v72 = vpack.c.bf16 %v71, %v70
    %v73 = vld [vmem:[%s2] sm:$0xf]
    %v74 = vld [vmem:[%s2 + $0x4] sm:$0xf]
    %v75 = vld [vmem:[%s2 + $0x8] sm:$0xf]
    %v76 = vld [vmem:[%s2 + $0xc] sm:$0xf]
    %v77 = vld [vmem:[%s2 + $0x10] sm:$0xf]
    %v78 = vld [vmem:[%s2 + $0x14] sm:$0xf]
    %v79 = vld [vmem:[%s2 + $0x18] sm:$0xf]
    %v80 = vld [vmem:[%s2 + $0x1c] sm:$0xf]
    %v81 = vld [vmem:[%s2 + $0x20] sm:$0xf]
    %v82 = vld [vmem:[%s2 + $0x24] sm:$0xf]
    %v83 = vld [vmem:[%s2 + $0x28] sm:$0xf]
    %v84 = vld [vmem:[%s2 + $0x2c] sm:$0xf]
    %v85 = vld [vmem:[%s2 + $0x30] sm:$0xf]
    %v86 = vld [vmem:[%s2 + $0x34] sm:$0xf]
    %v87 = vld [vmem:[%s2 + $0x38] sm:$0xf]
    %v88 = vld [vmem:[%s2 + $0x3c] sm:$0xf]
    %v105 = vunpack.c.l.b16 %v73
    %v106 = vunpack.c.l.b16 %v74
    %v107 = vunpack.c.l.b16 %v75
    %v108 = vunpack.c.l.b16 %v76
    %v109 = vunpack.c.l.b16 %v77
    %v110 = vunpack.c.l.b16 %v78
    %v111 = vunpack.c.l.b16 %v79
    %v112 = vunpack.c.l.b16 %v80
    %v113 = vunpack.c.l.b16 %v81
    %v114 = vunpack.c.l.b16 %v82
    %v115 = vunpack.c.l.b16 %v83
    %v116 = vunpack.c.l.b16 %v84
    %v117 = vunpack.c.l.b16 %v85
    %v118 = vunpack.c.l.b16 %v86
    %v119 = vunpack.c.l.b16 %v87
    %v120 = vunpack.c.l.b16 %v88
    %v121 = vpack.c.b16 %v106, %v105
    %v122 = vpack.c.b16 %v108, %v107
    %v123 = vpack.c.b16 %v110, %v109
    %v124 = vpack.c.b16 %v112, %v111
    %v125 = vpack.c.b16 %v114, %v113
    %v126 = vpack.c.b16 %v116, %v115
    %v127 = vpack.c.b16 %v118, %v117
    %v128 = vpack.c.b16 %v120, %v119
    %137 = vmatpush.bf16.msra.mxu0 %v128
    %138 = vmatpush.bf16.msra.mxu0 %v127
    %139 = vmatpush.bf16.msra.mxu0 %v126
    %140 = vmatpush.bf16.msra.mxu0 %v125
    %141 = vmatpush.bf16.msra.mxu0 %v124
    %142 = vmatpush.bf16.msra.mxu0 %v123
    %143 = vmatpush.bf16.msra.mxu0 %v122
    %144 = vmatpush.bf16.msra.mxu0 %v121
    %145 = vmatmul.bf16.gmra.mxu0 %v72
    %v146 = vpop.f32.mrf.mxu0
    %v147 = vadd.f32 0.0, %v146
    %v148 = vpop.f32.mrf.mxu0
    %v149 = vadd.f32 0.0, %v148
    %150 = vdwg.mxu0
    %v151 = vpack.c.bf16 %v147, %v147
    %v152 = vpack.c.bf16 %v149, %v149
    %153 = vst [vmem:[%s3] sm:$0xf] %v151
    %154 = vst [vmem:[%s3 + $0x4] sm:$0xf] %v152
    %v155 = vadd.f32 %v147, %v149
    %v156 = vrot.slane %v155, 4
    %v157 = vadd.f32 %v155, %v156
    %v158 = vrot.slane %v157, 2
    %v159 = vadd.f32 %v157, %v158
    %v160 = vrot.slane %v159, 1
    %v161 = vadd.f32 %v159, %v160
    %v162 = vmul.f32 %v147, %v147
    %v163 = vmul.f32 %v149, %v149
    %v164 = vadd.f32 %v162, %v163
    %v165 = vrot.slane %v164, 4
    %v166 = vadd.f32 %v164, %v165
    %v167 = vrot.slane %v166, 2
    %v168 = vadd.f32 %v166, %v167
    %v169 = vrot.slane %v168, 1
    %v170 = vadd.f32 %v168, %v169
    %v171 = vlaneseq
    %v172 = vshrl.u32 %v171, 7
    %vm173 = vcmp.eq.s32.totalorder %v172, 0
    %v174 = vsel %vm173, %v161, %v170
    %175 = vst [vmem:[%s4] sm:$0x3] %v174
  $region21: #{graph_conv_block.2} parent=0 // pred_fallthru
    _
  // Predicated region
  $region22: #{graph_conv_block.2} parent=0 // pred_check
    _
  $region23: #{graph_conv_block.2} parent=0 // pred_check_branch
    %177 = sbr.rel (0) target = $region25
  $region24: #{graph_conv_block.2} parent=0 // pred_region
    _
  $region25: #{graph_conv_block.2} parent=0 // pred_fallthru
    _
  // Predicated region
  $region26: #{graph_conv_block.2} parent=0 // pred_check
    _
  $region27: #{graph_conv_block.2} parent=0 // pred_check_branch
    %179 = sbr.rel (0) target = $region29
  $region28: #{graph_conv_block.2} parent=0 // pred_region
    _
  $region29: #{graph_conv_block.2} parent=0 // pred_fallthru
    _
  // Predicated region
  $region30: #{graph_conv_block.2} parent=0 // pred_check
    _
  $region31: #{graph_conv_block.2} parent=0 // pred_check_branch
    %181 = sbr.rel (0) target = $region33
  $region32: #{graph_conv_block.2} parent=0 // pred_region
    _
  $region33: #{graph_conv_block.2} parent=0 // pred_fallthru
    _
  // Predicated region
  $region34: #{graph_conv_block.2} parent=0 // pred_check
    _
  $region35: #{graph_conv_block.2} parent=0 // pred_check_branch
    %183 = sbr.rel (0) target = $region37
  $region36: #{graph_conv_block.2} parent=0 // pred_region
    _
  $region37: #{graph_conv_block.2} parent=0 // pred_fallthru
    _

</llo_original>
